<compile_context>
chip_gen: v7x
topology: tpu7x:2x2x1
jax: 0.10.0
libtpu: 0.0.40
codegen_flags: <defaults>
</compile_context>

<pallas_src>
import functools

import jax
import jax.numpy as jnp
from jax.experimental import pallas as pl
from jax.experimental.pallas import tpu as pltpu

IN_DIM = 50
HID_DIM = 50
OUT_DIM = 3


def mlp_kernel(x_ref, w1_ref, b1_ref, w2_ref, b2_ref, o_ref):
    # x: (tile_b, 50) f32 ; w1: (50, 50) f32 ; b1: (1, 50) f32
    # w2: (50, 3)  f32    ; b2: (1, 3)  f32  ; o: (tile_b, 3) f32
    x = x_ref[...].astype(jnp.bfloat16)          # cast on VPU, hidden under DMA
    w1 = w1_ref[...].astype(jnp.bfloat16)        # resident weights, trivial cast
    w2 = w2_ref[...].astype(jnp.bfloat16)

    h = jnp.dot(x, w1, preferred_element_type=jnp.float32) + b1_ref[...]
    h = jnp.maximum(h, 0.0)                      # ReLU
    # NOTE: the 50x3 second matmul underfills the MXU and the (tile_b, 3) store
    # is lane-masked, but the absolute cost is tiny relative to the x DMA.
    y = jnp.dot(h.astype(jnp.bfloat16), w2,
                preferred_element_type=jnp.float32) + b2_ref[...]
    o_ref[...] = y.astype(o_ref.dtype)


def _round_up(n, m):
    return ((n + m - 1) // m) * m


@functools.partial(jax.jit, static_argnames=("tile_b",))
def net_forward(x, w1, b1, w2, b2, *, tile_b=4096):
    """Forward pass matching torch `Net`: linear(50->50) -> ReLU -> linear(50->3)."""
    B = x.shape[0]

    # Cap tile so the grid keeps >= 2 steps when possible (megacore on v7x),
    # rounded to 16 rows (bf16-friendly sublane packing).  Small batches use a
    # single block whose batch dim equals B exactly (block == full array dim,
    # so the (8,128) divisibility rule is trivially satisfied).
    cap = min(tile_b, max(16, _round_up(pl.cdiv(B, 2), 16)))
    tile_b = B if B <= cap else cap
    grid = (pl.cdiv(B, tile_b),)                 # ragged last block is masked

    weight_bytes = (IN_DIM * HID_DIM + HID_DIM + HID_DIM * OUT_DIM + OUT_DIM) * 4
    cost = pl.CostEstimate(
        flops=2 * B * (IN_DIM * HID_DIM + HID_DIM * OUT_DIM),
        transcendentals=0,
        bytes_accessed=B * (IN_DIM * 4 + OUT_DIM * 4) + weight_bytes,
    )

    out = pl.pallas_call(
        mlp_kernel,
        out_shape=jax.ShapeDtypeStruct((B, OUT_DIM), jnp.float32),
        grid=grid,
        in_specs=[
            pl.BlockSpec((tile_b, IN_DIM), lambda i: (i, 0)),    # streamed x tiles
            pl.BlockSpec((IN_DIM, HID_DIM), lambda i: (0, 0)),   # resident w1
            pl.BlockSpec((1, HID_DIM), lambda i: (0, 0)),        # resident b1
            pl.BlockSpec((HID_DIM, OUT_DIM), lambda i: (0, 0)),  # resident w2
            pl.BlockSpec((1, OUT_DIM), lambda i: (0, 0)),        # resident b2
        ],
        out_specs=pl.BlockSpec((tile_b, OUT_DIM), lambda i: (i, 0)),
        compiler_params=pltpu.CompilerParams(
            dimension_semantics=("parallel",),   # megacore-shard batch on v7x
        ),
        cost_estimate=cost,
    )(x, w1, b1, w2, b2)
    return out


def init_params(key):
    # Deterministic init mirroring nn.Linear's U(-1/sqrt(fan_in), 1/sqrt(fan_in)).
    k1, k2, k3, k4 = jax.random.split(key, 4)
    bound1 = 1.0 / jnp.sqrt(IN_DIM)
    bound2 = 1.0 / jnp.sqrt(HID_DIM)
    # stored as (in, out) — transposed relative to torch's (out, in)
    w1 = jax.random.uniform(k1, (IN_DIM, HID_DIM), jnp.float32, -bound1, bound1)
    b1 = jax.random.uniform(k2, (1, HID_DIM), jnp.float32, -bound1, bound1)
    w2 = jax.random.uniform(k3, (HID_DIM, OUT_DIM), jnp.float32, -bound2, bound2)
    b2 = jax.random.uniform(k4, (1, OUT_DIM), jnp.float32, -bound2, bound2)
    return w1, b1, w2, b2


def ref_bf16(x, w1, b1, w2, b2):
    """Pure-JAX reference with the same bf16 operand casting as the kernel."""
    xb, w1b, w2b = (a.astype(jnp.bfloat16) for a in (x, w1, w2))
    h = jnp.maximum(jnp.dot(xb, w1b, preferred_element_type=jnp.float32) + b1, 0.0)
    return jnp.dot(h.astype(jnp.bfloat16), w2b,
                   preferred_element_type=jnp.float32) + b2


def ref_f32(x, w1, b1, w2, b2):
    return jnp.maximum(x @ w1 + b1, 0.0) @ w2 + b2


def _check(x, w1, b1, w2, b2):
    out = net_forward(x, w1, b1, w2, b2)
    jax.block_until_ready(out)
    assert out.shape == (x.shape[0], OUT_DIM)
    assert jnp.allclose(out, ref_bf16(x, w1, b1, w2, b2), atol=1e-4, rtol=1e-4)
    assert jnp.allclose(out, ref_f32(x, w1, b1, w2, b2), atol=5e-2, rtol=5e-2)
    return out


if __name__ == "__main__":
    key = jax.random.PRNGKey(0)
    kx1, kx2, kx3, kp = jax.random.split(key, 4)
    w1, b1, w2, b2 = init_params(kp)

    # Small batch: single block, block dims == array dims.
    _check(jax.random.normal(kx1, (8, IN_DIM), jnp.float32), w1, b1, w2, b2)

    # Ragged batch (not a multiple of 8/16): exercises the masked last block.
    _check(jax.random.normal(kx2, (37, IN_DIM), jnp.float32), w1, b1, w2, b2)

    # Larger batch: >= 2 grid steps, pipelined/megacore path, ragged tail.
    _check(jax.random.normal(kx3, (1040, IN_DIM), jnp.float32), w1, b1, w2, b2)

    print("KERNEL_OK")
</pallas_src>

<mosaic_0001>
module attributes {stable_mosaic.version = 11 : i64} {
  func.func @mlp_kernel(%arg0: i32, %arg1: memref<8x50xf32, #tpu.memory_space<vmem>>, %arg2: memref<50x50xf32, #tpu.memory_space<vmem>>, %arg3: memref<1x50xf32, #tpu.memory_space<vmem>>, %arg4: memref<50x3xf32, #tpu.memory_space<vmem>>, %arg5: memref<1x3xf32, #tpu.memory_space<vmem>>, %arg6: memref<8x3xf32, #tpu.memory_space<vmem>>) attributes {dimension_semantics = [#tpu.dimension_semantics<parallel>], iteration_bounds = array<i64: 1>, scalar_prefetch = 0 : i64, scratch_operands = 0 : i64, tpu.core_type = #tpu.core_type<tc>, window_params = [{transform_indices = @transform_0, window_bounds = array<i64: 8, 50>}, {pipeline_mode = #tpu.pipeline_mode<synchronous>, transform_indices = @transform_1, window_bounds = array<i64: 50, 50>}, {pipeline_mode = #tpu.pipeline_mode<synchronous>, transform_indices = @transform_2, window_bounds = array<i64: 1, 50>}, {pipeline_mode = #tpu.pipeline_mode<synchronous>, transform_indices = @transform_3, window_bounds = array<i64: 50, 3>}, {pipeline_mode = #tpu.pipeline_mode<synchronous>, transform_indices = @transform_4, window_bounds = array<i64: 1, 3>}, {transform_indices = @transform_5, window_bounds = array<i64: 8, 3>}]} {
    %c0 = arith.constant 0 : index
    %c0_0 = arith.constant 0 : index
    %0 = vector.load %arg1[%c0, %c0_0] : memref<8x50xf32, #tpu.memory_space<vmem>>, vector<8x50xf32>
    %1 = arith.truncf %0 : vector<8x50xf32> to vector<8x50xbf16>
    %c0_1 = arith.constant 0 : index
    %c0_2 = arith.constant 0 : index
    %2 = vector.load %arg2[%c0_1, %c0_2] : memref<50x50xf32, #tpu.memory_space<vmem>>, vector<50x50xf32>
    %3 = arith.truncf %2 : vector<50x50xf32> to vector<50x50xbf16>
    %c0_3 = arith.constant 0 : index
    %c0_4 = arith.constant 0 : index
    %4 = vector.load %arg4[%c0_3, %c0_4] : memref<50x3xf32, #tpu.memory_space<vmem>>, vector<50x3xf32>
    %5 = arith.truncf %4 : vector<50x3xf32> to vector<50x3xbf16>
    %cst = arith.constant dense<0.000000e+00> : vector<8x50xf32>
    %6 = tpu.matmul %1, %3, %cst {dimension_numbers = #tpu.dot_dimension_numbers<[1], [0], [0], [1], [0, 0, 1, 1], [], []>} : vector<8x50xbf16>, vector<50x50xbf16>, vector<8x50xf32> -> vector<8x50xf32>
    %c0_5 = arith.constant 0 : index
    %c0_6 = arith.constant 0 : index
    %7 = vector.load %arg3[%c0_5, %c0_6] : memref<1x50xf32, #tpu.memory_space<vmem>>, vector<1x50xf32>
    %8 = vector.broadcast %7 : vector<1x50xf32> to vector<8x50xf32>
    %9 = arith.addf %6, %8 : vector<8x50xf32>
    %cst_7 = arith.constant 0.000000e+00 : f32
    %10 = vector.broadcast %cst_7 : f32 to vector<8x50xf32>
    %11 = arith.maximumf %9, %10 : vector<8x50xf32>
    %12 = arith.truncf %11 : vector<8x50xf32> to vector<8x50xbf16>
    %cst_8 = arith.constant dense<0.000000e+00> : vector<8x3xf32>
    %13 = tpu.matmul %12, %5, %cst_8 {dimension_numbers = #tpu.dot_dimension_numbers<[1], [0], [0], [1], [0, 0, 1, 1], [], []>} : vector<8x50xbf16>, vector<50x3xbf16>, vector<8x3xf32> -> vector<8x3xf32>
    %c0_9 = arith.constant 0 : index
    %c0_10 = arith.constant 0 : index
    %14 = vector.load %arg5[%c0_9, %c0_10] : memref<1x3xf32, #tpu.memory_space<vmem>>, vector<1x3xf32>
    %15 = vector.broadcast %14 : vector<1x3xf32> to vector<8x3xf32>
    %16 = arith.addf %13, %15 : vector<8x3xf32>
    %c0_11 = arith.constant 0 : index
    %c0_12 = arith.constant 0 : index
    %17 = vector.load %arg6[%c0_11, %c0_12] : memref<8x3xf32, #tpu.memory_space<vmem>>, vector<8x3xf32>
    tpu.vector_store %arg6[%c0_11, %c0_12], %16 {strides = array<i32>} : memref<8x3xf32, #tpu.memory_space<vmem>>, vector<8x3xf32>,
    return
  }
  func.func @transform_0(%arg0: i32) -> (i32, i32) {
    %c0_i32 = arith.constant 0 : i32
    %c0_i32_0 = arith.constant 0 : i32
    return %arg0, %c0_i32 : i32, i32
  }
  func.func @transform_1(%arg0: i32) -> (i32, i32) {
    %c0_i32 = arith.constant 0 : i32
    %c0_i32_0 = arith.constant 0 : i32
    %c0_i32_1 = arith.constant 0 : i32
    return %c0_i32, %c0_i32_0 : i32, i32
  }
  func.func @transform_2(%arg0: i32) -> (i32, i32) {
    %c0_i32 = arith.constant 0 : i32
    %c0_i32_0 = arith.constant 0 : i32
    %c0_i32_1 = arith.constant 0 : i32
    return %c0_i32, %c0_i32_0 : i32, i32
  }
  func.func @transform_3(%arg0: i32) -> (i32, i32) {
    %c0_i32 = arith.constant 0 : i32
    %c0_i32_0 = arith.constant 0 : i32
    %c0_i32_1 = arith.constant 0 : i32
    return %c0_i32, %c0_i32_0 : i32, i32
  }
  func.func @transform_4(%arg0: i32) -> (i32, i32) {
    %c0_i32 = arith.constant 0 : i32
    %c0_i32_0 = arith.constant 0 : i32
    %c0_i32_1 = arith.constant 0 : i32
    return %c0_i32, %c0_i32_0 : i32, i32
  }
  func.func @transform_5(%arg0: i32) -> (i32, i32) {
    %c0_i32 = arith.constant 0 : i32
    %c0_i32_0 = arith.constant 0 : i32
    return %arg0, %c0_i32 : i32, i32
  }
}

</mosaic_0001>

<llo_original>
// kernel: net_forward.1
$region0: #{net_forward.1}
  #allocation0 [shape = 'u32[]', space=smem, size = 0x4, offset = 0x4, fixed_abs, tag = 'smem constant byte address 0x4 - core index']
  #allocation1 [shape = 'u32[144,128]{1,0:T(1,128)}', space=vmem, size = 0x12000, scoped, tag = 'internal scratch']
  %s0 = inlined_call_operand.hbm [shape: f32[8,50], index: 0, kind: input, shape index: {}]
  %s1 = inlined_call_operand.vmem [shape: f32[50,50], index: 1, kind: input, shape index: {}]
  %s2 = inlined_call_operand.vmem [shape: f32[1,50], index: 2, kind: input, shape index: {}]
  %s3 = inlined_call_operand.vmem [shape: f32[50,3], index: 3, kind: input, shape index: {}]
  %s4 = inlined_call_operand.vmem [shape: f32[1,3], index: 4, kind: input, shape index: {}]
  %s5 = inlined_call_operand.vmem [shape: f32[8,3], index: 5, kind: output, shape index: {}]
  %s6 = sld [smem:[#allocation0]]
  $region34: #{net_forward.1} parent=0
    _
  %s8 = ssub.s32 1, %s6
  %s9 = scalar_select 0, %s8, %s6
  $region1: #{net_forward.1} parent=0
    #allocation2 [shape = 'u8[4096]{0}', space=vmem, size = 0x1000, scoped, tag = 'input window, operand 0, single buffered']
    #allocation3 [shape = 's32[1]{0}', space=sflag, size = 0x4, scoped, tag = 'scoped memory for net_forward.1']
    %10 = vsyncpa [#allocation3], 0
    // Predicated region
    $region2: #{net_forward.1} parent=1 // pred_check
      _
    $region3: #{net_forward.1} parent=1 // pred_check_branch
      %12 = sbr.rel (0) target = $region5
    $region4: #{net_forward.1} parent=1 // pred_region
      %s14 = ssub.s32 128, 128
      %15 = vsyncadd [#allocation3], %s14
      %s17 = sshll.u32 [#allocation2], 4
      %s18 = int_to_ptr.vmem [resolvable:$true] %s17
      %20 = dma.hbm_to_vmem [thread:$0]  %s0, 128, %s18, [#allocation3]
    $region5: #{net_forward.1} parent=1 // pred_fallthru
      _
    // Predicated region
    $region6: #{net_forward.1} parent=1 // pred_check
      _
    $region7: #{net_forward.1} parent=1 // pred_check_branch
      %22 = sbr.rel (0) target = $region9
    $region8: #{net_forward.1} parent=1 // pred_region
      _
    $region9: #{net_forward.1} parent=1 // pred_fallthru
      _
    // Predicated region
    $region10: #{net_forward.1} parent=1 // pred_check
      _
    $region11: #{net_forward.1} parent=1 // pred_check_branch
      %24 = sbr.rel (0) target = $region13
    $region12: #{net_forward.1} parent=1 // pred_region
      _
    $region13: #{net_forward.1} parent=1 // pred_fallthru
      _
    // Predicated region
    $region14: #{net_forward.1} parent=1 // pred_check
      _
    $region15: #{net_forward.1} parent=1 // pred_check_branch
      %26 = sbr.rel (0) target = $region17
    $region16: #{net_forward.1} parent=1 // pred_region
      _
    $region17: #{net_forward.1} parent=1 // pred_fallthru
      _
    // Predicated region
    $region18: #{net_forward.1} parent=1 // pred_check
      _
    $region19: #{net_forward.1} parent=1 // pred_check_branch
      %28 = sbr.rel (0) target = $region21
    $region20: #{net_forward.1} parent=1 // pred_region
      _
    $region21: #{net_forward.1} parent=1 // pred_fallthru
      _
    // Predicated region
    $region22: #{net_forward.1} parent=1 // pred_check
      _
    $region23: #{net_forward.1} parent=1 // pred_check_branch
      %30 = sbr.rel (0) target = $region25
    $region24: #{net_forward.1} parent=1 // pred_region
      %31 = dma.done [#allocation3], 128
    $region25: #{net_forward.1} parent=1 // pred_fallthru
      _
    %v33 = vld [vmem:[#allocation2] sm:$0xff]
    %v34 = vpack.c.bf16 %v33, %v33
    %v35 = vld [vmem:[%s1] sm:$0xff]
    %v36 = vld [vmem:[%s1 + $0x8] sm:$0xff]
    %v37 = vld [vmem:[%s1 + $0x10] sm:$0xff]
    %v38 = vld [vmem:[%s1 + $0x18] sm:$0xff]
    %v39 = vld [vmem:[%s1 + $0x20] sm:$0xff]
    %v40 = vld [vmem:[%s1 + $0x28] sm:$0xff]
    %v41 = vld [vmem:[%s1 + $0x30] sm:$0x3]
    %v42 = vpack.c.bf16 %v36, %v35
    %v43 = vpack.c.bf16 %v38, %v37
    %v44 = vpack.c.bf16 %v40, %v39
    %v45 = vpack.c.bf16 %v41, %v41
    %v46 = vld [vmem:[%s3] sm:$0xff]
    %v47 = vld [vmem:[%s3 + $0x8] sm:$0xff]
    %v48 = vld [vmem:[%s3 + $0x10] sm:$0xff]
    %v49 = vld [vmem:[%s3 + $0x18] sm:$0xff]
    %v50 = vld [vmem:[%s3 + $0x20] sm:$0xff]
    %v51 = vld [vmem:[%s3 + $0x28] sm:$0xff]
    %v52 = vld [vmem:[%s3 + $0x30] sm:$0x3]
    %v53 = vpack.c.bf16 %v47, %v46
    %v54 = vpack.c.bf16 %v49, %v48
    %v55 = vpack.c.bf16 %v51, %v50
    %v56 = vpack.c.bf16 %v52, %v52
    %v57 = vld [vmem:[%s2] sm:$0x1]
    %v59 = vlaneseq
    %v60 = vshrl.u32 %v59, 7
    %v61 = vsub.s32 0, %v60
    %v62 = vrot.slane %v57, %v61
    %vm64 = vcmask 408576
    %v66 = vsel %vm64, %v34, 0
    %vm68 = vcmask 1040384
    %v70 = vsel %vm68, %v45, 0
    %72 = vmatprep.subr.bf16.mxu0 0
    %73 = vmatpush1.bf16.msra.mxu0 %v42
    %74 = vmatprep.subr.bf16.mxu0 0
    %75 = vmatpush1.bf16.msra.mxu0 %v43
    %76 = vmatprep.subr.bf16.mxu0 0
    %77 = vmatpush1.bf16.msra.mxu0 %v44
    %78 = vmatprep.subr.bf16.mxu0 0
    %79 = vmatpush1.bf16.msra.mxu0 %v70
    %80 = vmatprep.subr.bf16.mxu0 0
    %81 = vmatpush1.bf16.msra.mxu0 0
    %82 = vmatprep.subr.bf16.mxu0 0
    %83 = vmatpush1.bf16.msra.mxu0 0
    %84 = vmatprep.subr.bf16.mxu0 0
    %85 = vmatpush1.bf16.msra.mxu0 0
    %86 = vmatprep.subr.bf16.mxu0 0
    %87 = vmatpush1.bf16.msra.mxu0 0
    %88 = vmatprep.subr.bf16.mxu0 0
    %89 = vmatpush1.bf16.msra.mxu0 0
    %90 = vmatprep.subr.bf16.mxu0 0
    %91 = vmatpush1.bf16.msra.mxu0 0
    %92 = vmatprep.subr.bf16.mxu0 0
    %93 = vmatpush1.bf16.msra.mxu0 0
    %94 = vmatprep.subr.bf16.mxu0 0
    %95 = vmatpush1.bf16.msra.mxu0 0
    %96 = vmatprep.subr.bf16.mxu0 0
    %97 = vmatpush1.bf16.msra.mxu0 0
    %98 = vmatprep.subr.bf16.mxu0 0
    %99 = vmatpush1.bf16.msra.mxu0 0
    %100 = vmatprep.subr.bf16.mxu0 0
    %101 = vmatpush1.bf16.msra.mxu0 0
    %102 = vmatprep.subr.bf16.mxu0 0
    %103 = vmatpush1.bf16.msra.mxu0 0
    %104 = vmatprep.mubr.bf16.mxu0 0
    %105 = vmatmul.mubr.bf16.gmra.mrb[0].mxu0 %v66
    %v106 = vpop.f32.mrb[0].mxu0
    %v107 = vadd.f32 %v62, %v106
    %v108 = vpop.f32.mrb[0].mxu0
    %v109 = vpop.f32.mrb[0].mxu0
    %v110 = vpop.f32.mrb[0].mxu0
    %111 = vdwg.mxu0
    %v112 = vmax.f32 %v107, 0.0
    %v113 = vpack.c.bf16 %v112, %v112
    %v114 = vld [vmem:[%s4] sm:$0x1]
    %v116 = vlaneseq
    %v117 = vshrl.u32 %v116, 7
    %v118 = vsub.s32 0, %v117
    %v119 = vrot.slane %v114, %v118
    %v122 = vsel %vm64, %v113, 0
    %v125 = vsel %vm68, %v56, 0
    %127 = vmatprep.subr.bf16.mxu0 0
    %128 = vmatpush1.bf16.msra.mxu0 %v53
    %129 = vmatprep.subr.bf16.mxu0 0
    %130 = vmatpush1.bf16.msra.mxu0 %v54
    %131 = vmatprep.subr.bf16.mxu0 0
    %132 = vmatpush1.bf16.msra.mxu0 %v55
    %133 = vmatprep.subr.bf16.mxu0 0
    %134 = vmatpush1.bf16.msra.mxu0 %v125
    %135 = vmatprep.subr.bf16.mxu0 0
    %136 = vmatpush1.bf16.msra.mxu0 0
    %137 = vmatprep.subr.bf16.mxu0 0
    %138 = vmatpush1.bf16.msra.mxu0 0
    %139 = vmatprep.subr.bf16.mxu0 0
    %140 = vmatpush1.bf16.msra.mxu0 0
    %141 = vmatprep.subr.bf16.mxu0 0
    %142 = vmatpush1.bf16.msra.mxu0 0
    %143 = vmatprep.subr.bf16.mxu0 0
    %144 = vmatpush1.bf16.msra.mxu0 0
    %145 = vmatprep.subr.bf16.mxu0 0
    %146 = vmatpush1.bf16.msra.mxu0 0
    %147 = vmatprep.subr.bf16.mxu0 0
    %148 = vmatpush1.bf16.msra.mxu0 0
    %149 = vmatprep.subr.bf16.mxu0 0
    %150 = vmatpush1.bf16.msra.mxu0 0
    %151 = vmatprep.subr.bf16.mxu0 0
    %152 = vmatpush1.bf16.msra.mxu0 0
    %153 = vmatprep.subr.bf16.mxu0 0
    %154 = vmatpush1.bf16.msra.mxu0 0
    %155 = vmatprep.subr.bf16.mxu0 0
    %156 = vmatpush1.bf16.msra.mxu0 0
    %157 = vmatprep.subr.bf16.mxu0 0
    %158 = vmatpush1.bf16.msra.mxu0 0
    %159 = vmatprep.mubr.bf16.mxu0 0
    %160 = vmatmul.mubr.bf16.gmra.mrb[0].mxu0 %v122
    %v161 = vpop.f32.mrb[0].mxu0
    %v162 = vadd.f32 %v119, %v161
    %v163 = vpop.f32.mrb[0].mxu0
    %v164 = vpop.f32.mrb[0].mxu0
    %v165 = vpop.f32.mrb[0].mxu0
    %166 = vdwg.mxu0
    %vm167 = vcmask 23552
    %168 = vst.msk [vmem:[%s5] sm:$0xff] %vm167, %v162
    // Predicated region
    $region26: #{net_forward.1} parent=1 // pred_check
      _
    $region27: #{net_forward.1} parent=1 // pred_check_branch
      %170 = sbr.rel (0) target = $region29
    $region28: #{net_forward.1} parent=1 // pred_region
      _
    $region29: #{net_forward.1} parent=1 // pred_fallthru
      _
    // Predicated region
    $region30: #{net_forward.1} parent=1 // pred_check
      _
    $region31: #{net_forward.1} parent=1 // pred_check_branch
      %172 = sbr.rel (0) target = $region33
    $region32: #{net_forward.1} parent=1 // pred_region
      _
    $region33: #{net_forward.1} parent=1 // pred_fallthru
      _
    %173 = vsyncpa [#allocation3], 1

</llo_original>
